<compile_context>
chip_gen: v7x
topology: tpu7x:2x2x1
jax: 0.10.0
libtpu: 0.0.40
codegen_flags: <defaults>
</compile_context>

<pallas_src>
import math
import functools

import jax
import jax.numpy as jnp
from jax.experimental import pallas as pl
from jax.experimental.pallas import tpu as pltpu


def _round_up(v: int, m: int) -> int:
    return (v + m - 1) // m * m


def _pick_tile(dim: int, cap: int, align: int = 128, min_blocks: int = 1) -> int:
    """Largest multiple of `align` that divides `dim`, is <= cap and yields
    at least `min_blocks` blocks (falls back to `align` if impossible)."""
    best = align
    t = align
    limit = min(dim, max(cap, align))
    while t <= limit:
        if dim % t == 0 and dim // t >= min_blocks:
            best = t
        t += align
    return best


def _vmem_capacity_bytes() -> int:
    try:
        return int(pltpu.get_tpu_info().vmem_capacity_bytes)
    except Exception:
        return 64 << 20  # conservative lower bound (v7x per-TC VMEM)


# ----------------------------------------------------------------------------
# Kernels
# ----------------------------------------------------------------------------
def _rnn_cell_kernel_single_k(xh_ref, w_ref, b_ref, *rest,
                              nonlinearity: str, ct: bool, alpha: float):
    """Single reduction tile: dot + bias + activation straight to out_ref."""
    if ct:
        h_ref, out_ref = rest
    else:
        (out_ref,) = rest
    z = jnp.dot(xh_ref[...], w_ref[...], preferred_element_type=jnp.float32)
    z = z + b_ref[...]
    if nonlinearity == 'tanh':
        a = jnp.tanh(z)                      # EUP
    else:                                    # 'relu'
        a = jnp.maximum(z, 0.0)              # VPU
    if ct:
        a = (1.0 - alpha) * h_ref[...].astype(jnp.float32) + alpha * a
    out_ref[...] = a.astype(out_ref.dtype)


def _rnn_cell_kernel_multi_k(xh_ref, w_ref, b_ref, *rest,
                             nonlinearity: str, ct: bool, alpha: float):
    """K-tiled reduction with an f32 VMEM accumulator and pl.when init/finalize."""
    if ct:
        h_ref, out_ref, acc_ref = rest
    else:
        out_ref, acc_ref = rest

    k = pl.program_id(2)

    @pl.when(k == 0)
    def _init():
        acc_ref[...] = jnp.zeros_like(acc_ref)

    acc_ref[...] += jnp.dot(xh_ref[...], w_ref[...],
                            preferred_element_type=jnp.float32)

    @pl.when(k == pl.num_programs(2) - 1)
    def _finalize():
        z = acc_ref[...] + b_ref[...]
        if nonlinearity == 'tanh':
            a = jnp.tanh(z)
        else:
            a = jnp.maximum(z, 0.0)
        if ct:
            a = (1.0 - alpha) * h_ref[...].astype(jnp.float32) + alpha * a
        out_ref[...] = a.astype(out_ref.dtype)


# ----------------------------------------------------------------------------
# Parameter preparation (call ONCE, reuse across timesteps / calls)
# ----------------------------------------------------------------------------
def vanilla_rnn_cell_prepare(weight_ih, weight_hh, bias, *,
                             mxu_dtype=jnp.bfloat16):
    """Fuse [W_ih; W_hh], zero-pad to (Kp, Hp) multiples of 128 and cast to the
    MXU dtype once.  Hoisting this out of the per-step call removes a full
    HBM rewrite of the weights on every cell invocation."""
    I, H = weight_ih.shape
    assert weight_hh.shape == (H, H), "weight_hh must be [hidden, hidden]"
    K = I + H
    Hp = _round_up(H, 128)
    Kp = _round_up(K, 128)
    w_dtype = mxu_dtype if mxu_dtype is not None else weight_ih.dtype
    w = jnp.concatenate([weight_ih, weight_hh], axis=0).astype(w_dtype)   # [K, H]
    w_p = jnp.zeros((Kp, Hp), w_dtype).at[:K, :H].set(w)
    b_p = jnp.zeros((1, Hp), jnp.float32).at[0, :H].set(bias.astype(jnp.float32))
    return {"w": w_p, "b": b_p, "input_size": I, "hidden_size": H}


# ----------------------------------------------------------------------------
# Per-step application
# ----------------------------------------------------------------------------
def vanilla_rnn_cell_apply(params, inp, hidden_in, *, nonlinearity='tanh',
                           ct=False, alpha=0.1,
                           tm_cap=512, tn_cap=512, tk_cap=2048):
    """One RNN cell step with prepared (fused/padded/cast) parameters.

    inp:       [B, input_size]
    hidden_in: [B, hidden_size]
    returns:   [B, hidden_size]
    """
    if nonlinearity not in ('tanh', 'relu'):
        raise RuntimeError('Unknown nonlinearity: {}'.format(nonlinearity))

    w_p, b_p = params["w"], params["b"]
    I, H = params["input_size"], params["hidden_size"]
    Kp, Hp = w_p.shape
    K = I + H
    B = inp.shape[0]
    out_dtype = hidden_in.dtype
    act_dtype = w_p.dtype  # MXU operand dtype (bf16 by default, f32 if exact)

    # ---- tile selection ----------------------------------------------------
    tm = min(_round_up(B, 8), tm_cap)
    Bp = _round_up(B, tm)
    tn = _pick_tile(Hp, tn_cap, 128)
    # v7x megacore: if the batch axis is a single block, keep >= 2 output
    # blocks so both TensorCores get work (no-op when Hp == 128).
    if Bp // tm == 1 and Hp // tn < 2:
        tn = _pick_tile(Hp, tn_cap, 128, min_blocks=2)
    tk = _pick_tile(Kp, tk_cap, 128)
    n_k = Kp // tk

    # ---- build the fused [x | h] activation with minimal materialization ----
    pieces = [inp.astype(act_dtype), hidden_in.astype(act_dtype)]
    if Kp > K:
        pieces.append(jnp.zeros((B, Kp - K), act_dtype))
    xh_p = jnp.concatenate(pieces, axis=1)            # [B, Kp] in one op
    if Bp > B:
        xh_p = jnp.pad(xh_p, ((0, Bp - B), (0, 0)))

    in_arrays = [xh_p, w_p, b_p]
    if ct:
        h_in = hidden_in
        if Bp > B or Hp > H:                          # skip pad when aligned
            h_in = jnp.pad(hidden_in, ((0, Bp - B), (0, Hp - H)))
        in_arrays.append(h_in)

    # ---- VMEM budget (generation-aware, no hard-coded 64 MiB) ---------------
    def _nbytes(shape, dt):
        n = 1
        for s in shape:
            n *= s
        return n * jnp.dtype(dt).itemsize

    tile_bytes = (_nbytes((tm, tk), act_dtype) + _nbytes((tk, tn), w_p.dtype)
                  + _nbytes((1, tn), jnp.float32) + _nbytes((tm, tn), out_dtype))
    if ct:
        tile_bytes += _nbytes((tm, tn), hidden_in.dtype)
    acc_bytes = 0 if n_k == 1 else tm * tn * 4
    budget = 2 * tile_bytes + acc_bytes + (2 << 20)   # double-buffer + headroom
    cap = _vmem_capacity_bytes()
    vmem_limit = int(min(max(budget, 32 << 20), int(0.75 * cap)))

    # ---- specs / grid --------------------------------------------------------
    kernel_kwargs = dict(nonlinearity=nonlinearity, ct=ct, alpha=float(alpha))
    if n_k == 1:
        kernel = functools.partial(_rnn_cell_kernel_single_k, **kernel_kwargs)
        grid = (Bp // tm, Hp // tn)
        in_specs = [
            pl.BlockSpec((tm, tk), lambda i, j: (i, 0)),   # [x | h]
            pl.BlockSpec((tk, tn), lambda i, j: (0, j)),   # [W_ih ; W_hh]
            pl.BlockSpec((1, tn), lambda i, j: (0, j)),    # bias
        ]
        if ct:
            in_specs.append(pl.BlockSpec((tm, tn), lambda i, j: (i, j)))
        out_specs = pl.BlockSpec((tm, tn), lambda i, j: (i, j))
        scratch_shapes = []
        dim_sem = ("parallel", "parallel")
    else:
        kernel = functools.partial(_rnn_cell_kernel_multi_k, **kernel_kwargs)
        grid = (Bp // tm, Hp // tn, n_k)
        in_specs = [
            pl.BlockSpec((tm, tk), lambda i, j, k: (i, k)),
            pl.BlockSpec((tk, tn), lambda i, j, k: (k, j)),
            pl.BlockSpec((1, tn), lambda i, j, k: (0, j)),
        ]
        if ct:
            in_specs.append(pl.BlockSpec((tm, tn), lambda i, j, k: (i, j)))
        out_specs = pl.BlockSpec((tm, tn), lambda i, j, k: (i, j))
        scratch_shapes = [pltpu.VMEM((tm, tn), jnp.float32)]
        dim_sem = ("parallel", "parallel", "arbitrary")

    out_p = pl.pallas_call(
        kernel,
        out_shape=jax.ShapeDtypeStruct((Bp, Hp), out_dtype),
        grid_spec=pltpu.PrefetchScalarGridSpec(
            num_scalar_prefetch=0,
            grid=grid,
            in_specs=in_specs,
            out_specs=out_specs,
            scratch_shapes=scratch_shapes,
        ),
        compiler_params=pltpu.CompilerParams(
            dimension_semantics=dim_sem,
            vmem_limit_bytes=vmem_limit,
        ),
    )(*in_arrays)

    if Bp == B and Hp == H:
        return out_p
    return out_p[:B, :H]


def vanilla_rnn_cell(inp, hidden_in, weight_ih, weight_hh, bias, *,
                     nonlinearity='tanh', ct=False, alpha=0.1,
                     mxu_dtype=jnp.bfloat16):
    """Convenience one-shot path.  For sequence stepping, call
    vanilla_rnn_cell_prepare once and vanilla_rnn_cell_apply per step so the
    fused/padded/cast weight is not rebuilt in HBM every call."""
    params = vanilla_rnn_cell_prepare(weight_ih, weight_hh, bias,
                                      mxu_dtype=mxu_dtype)
    return vanilla_rnn_cell_apply(params, inp, hidden_in,
                                  nonlinearity=nonlinearity, ct=ct, alpha=alpha)


# ----------------------------------------------------------------------------
# Reference & test
# ----------------------------------------------------------------------------
def _reference(inp, hidden_in, weight_ih, weight_hh, bias,
               *, nonlinearity='tanh', ct=False):
    act = jnp.tanh if nonlinearity == 'tanh' else (lambda v: jnp.maximum(v, 0.0))
    pre = inp @ weight_ih + hidden_in @ weight_hh + bias
    a = act(pre)
    if ct:
        alpha = 0.1
        return (1 - alpha) * hidden_in + alpha * a
    return a


if __name__ == "__main__":
    key = jax.random.PRNGKey(0)
    B, input_size, hidden_size = 4, 16, 32
    stdv = 1.0 / math.sqrt(hidden_size)

    k_x, k_h, k_wih, k_whh, k_b = jax.random.split(key, 5)
    # Deterministic parameter init mirroring reset_parameters(): U(-stdv, stdv)
    weight_ih = jax.random.uniform(k_wih, (input_size, hidden_size),
                                   jnp.float32, -stdv, stdv)
    weight_hh = jax.random.uniform(k_whh, (hidden_size, hidden_size),
                                   jnp.float32, -stdv, stdv)
    bias = jax.random.uniform(k_b, (hidden_size,), jnp.float32, -stdv, stdv)

    inp = jax.random.normal(k_x, (B, input_size), jnp.float32)
    hidden_in = jax.random.normal(k_h, (B, hidden_size), jnp.float32)

    # --- exact f32 MXU path (mxu_dtype=None), tight tolerance ----------------
    params_f32 = vanilla_rnn_cell_prepare(weight_ih, weight_hh, bias,
                                          mxu_dtype=None)
    out = jax.block_until_ready(
        vanilla_rnn_cell_apply(params_f32, inp, hidden_in,
                               nonlinearity='tanh', ct=False))
    ref = _reference(inp, hidden_in, weight_ih, weight_hh, bias,
                     nonlinearity='tanh', ct=False)
    assert out.shape == (B, hidden_size)
    assert jnp.allclose(out, ref, atol=1e-5, rtol=1e-5)

    # --- default bf16-MXU path (f32 accumulate + f32 epilogue) ---------------
    params = vanilla_rnn_cell_prepare(weight_ih, weight_hh, bias)  # bf16 default
    for nl, use_ct in (('tanh', False), ('tanh', True), ('relu', False)):
        o = jax.block_until_ready(
            vanilla_rnn_cell_apply(params, inp, hidden_in,
                                   nonlinearity=nl, ct=use_ct))
        r = _reference(inp, hidden_in, weight_ih, weight_hh, bias,
                       nonlinearity=nl, ct=use_ct)
        assert jnp.allclose(o, r, atol=2e-2, rtol=2e-2), (nl, use_ct)

    # --- multi-K-tile / multi-output-tile path (accumulator kernel) ----------
    B2, I2, H2 = 12, 40, 160
    stdv2 = 1.0 / math.sqrt(H2)
    kk = jax.random.split(jax.random.PRNGKey(1), 5)
    wih2 = jax.random.uniform(kk[0], (I2, H2), jnp.float32, -stdv2, stdv2)
    whh2 = jax.random.uniform(kk[1], (H2, H2), jnp.float32, -stdv2, stdv2)
    b2 = jax.random.uniform(kk[2], (H2,), jnp.float32, -stdv2, stdv2)
    x2 = jax.random.normal(kk[3], (B2, I2), jnp.float32)
    h2 = jax.random.normal(kk[4], (B2, H2), jnp.float32)
    params2 = vanilla_rnn_cell_prepare(wih2, whh2, b2, mxu_dtype=None)
    o2 = jax.block_until_ready(
        vanilla_rnn_cell_apply(params2, x2, h2, nonlinearity='tanh', ct=True,
                               tk_cap=128, tn_cap=128))
    r2 = _reference(x2, h2, wih2, whh2, b2, nonlinearity='tanh', ct=True)
    assert o2.shape == (B2, H2)
    assert jnp.allclose(o2, r2, atol=2e-3, rtol=2e-3)

    # --- convenience one-shot wrapper ----------------------------------------
    o3 = jax.block_until_ready(
        vanilla_rnn_cell(inp, hidden_in, weight_ih, weight_hh, bias))
    assert jnp.allclose(o3, ref, atol=2e-2, rtol=2e-2)

    print("KERNEL_OK")
</pallas_src>

<mosaic_0001>
module attributes {stable_mosaic.version = 11 : i64} {
  func.func @_rnn_cell_kernel_single_k(%arg0: i32, %arg1: i32, %arg2: memref<8x128xf32, #tpu.memory_space<vmem>>, %arg3: memref<128x128xf32, #tpu.memory_space<vmem>>, %arg4: memref<1x128xf32, #tpu.memory_space<vmem>>, %arg5: memref<8x128xf32, #tpu.memory_space<vmem>>) attributes {dimension_semantics = [#tpu.dimension_semantics<parallel>, #tpu.dimension_semantics<parallel>], iteration_bounds = array<i64: 1, 1>, scalar_prefetch = 0 : i64, scratch_operands = 0 : i64, tpu.core_type = #tpu.core_type<tc>, window_params = [{transform_indices = @transform_0, window_bounds = array<i64: 8, 128>}, {transform_indices = @transform_1, window_bounds = array<i64: 128, 128>}, {transform_indices = @transform_2, window_bounds = array<i64: 1, 128>}, {transform_indices = @transform_3, window_bounds = array<i64: 8, 128>}]} {
    %c0 = arith.constant 0 : index
    %c0_0 = arith.constant 0 : index
    %0 = vector.load %arg2[%c0, %c0_0] : memref<8x128xf32, #tpu.memory_space<vmem>>, vector<8x128xf32>
    %c0_1 = arith.constant 0 : index
    %c0_2 = arith.constant 0 : index
    %1 = vector.load %arg3[%c0_1, %c0_2] : memref<128x128xf32, #tpu.memory_space<vmem>>, vector<128x128xf32>
    %cst = arith.constant dense<0.000000e+00> : vector<8x128xf32>
    %2 = tpu.matmul %0, %1, %cst {dimension_numbers = #tpu.dot_dimension_numbers<[1], [0], [0], [1], [0, 0, 1, 1], [], []>} : vector<8x128xf32>, vector<128x128xf32>, vector<8x128xf32> -> vector<8x128xf32>
    %c0_3 = arith.constant 0 : index
    %c0_4 = arith.constant 0 : index
    %3 = vector.load %arg4[%c0_3, %c0_4] : memref<1x128xf32, #tpu.memory_space<vmem>>, vector<1x128xf32>
    %4 = vector.broadcast %3 : vector<1x128xf32> to vector<8x128xf32>
    %5 = arith.addf %2, %4 : vector<8x128xf32>
    %6 = math.tanh %5 : vector<8x128xf32>
    %c0_5 = arith.constant 0 : index
    %c0_6 = arith.constant 0 : index
    %7 = vector.load %arg5[%c0_5, %c0_6] : memref<8x128xf32, #tpu.memory_space<vmem>>, vector<8x128xf32>
    tpu.vector_store %arg5[%c0_5, %c0_6], %6 {strides = array<i32>} : memref<8x128xf32, #tpu.memory_space<vmem>>, vector<8x128xf32>,
    return
  }
  func.func @transform_0(%arg0: i32, %arg1: i32) -> (i32, i32) {
    %c0_i32 = arith.constant 0 : i32
    %c0_i32_0 = arith.constant 0 : i32
    return %arg0, %c0_i32 : i32, i32
  }
  func.func @transform_1(%arg0: i32, %arg1: i32) -> (i32, i32) {
    %c0_i32 = arith.constant 0 : i32
    %c0_i32_0 = arith.constant 0 : i32
    return %c0_i32, %arg1 : i32, i32
  }
  func.func @transform_2(%arg0: i32, %arg1: i32) -> (i32, i32) {
    %c0_i32 = arith.constant 0 : i32
    %c0_i32_0 = arith.constant 0 : i32
    return %c0_i32, %arg1 : i32, i32
  }
  func.func @transform_3(%arg0: i32, %arg1: i32) -> (i32, i32) {
    %c0_i32 = arith.constant 0 : i32
    return %arg0, %arg1 : i32, i32
  }
}

</mosaic_0001>

<llo_original>
// kernel: tpu_custom_call.1
$region0: #{tpu_custom_call.1}
  #allocation0 [shape = 'u32[]', space=smem, size = 0x4, offset = 0x4, fixed_abs, tag = 'smem constant byte address 0x4 - core index']
  #allocation1 [shape = 'u32[144,128]{1,0:T(1,128)}', space=vmem, size = 0x12000, scoped, tag = 'internal scratch']
  %s0 = inlined_call_operand.hbm [shape: f32[8,128], index: 0, kind: input, shape index: {}]
  %s1 = inlined_call_operand.hbm [shape: f32[128,128], index: 1, kind: input, shape index: {}]
  %s2 = inlined_call_operand.vmem [shape: f32[1,128], index: 2, kind: input, shape index: {}]
  %s3 = inlined_call_operand.hbm [shape: f32[8,128], index: 3, kind: output, shape index: {}]
  %s4 = sld [smem:[#allocation0]]
  $region30: #{tpu_custom_call.1} parent=0
    _
  %s6 = ssub.s32 1, %s4
  %s7 = scalar_select 0, %s6, %s4
  $region1: #{tpu_custom_call.1} parent=0
    #allocation2 [shape = 'u8[4096]{0}', space=vmem, size = 0x1000, scoped, tag = 'input window, operand 0, single buffered']
    #allocation3 [shape = 's32[1]{0}', space=sflag, size = 0x4, scoped, tag = 'scoped memory for tpu_custom_call.1']
    #allocation4 [shape = 's32[1]{0}', space=sflag, size = 0x4, scoped, tag = 'scoped memory for tpu_custom_call.1']
    #allocation5 [shape = 'u8[65536]{0}', space=vmem, size = 0x10000, scoped, tag = 'input window, operand 1, single buffered']
    #allocation6 [shape = 's32[1]{0}', space=sflag, size = 0x4, scoped, tag = 'scoped memory for tpu_custom_call.1']
    #allocation7 [shape = 'u8[4096]{0}', space=vmem, size = 0x1000, scoped, tag = 'output window, operand 0, single buffered']
    %8 = vsyncpa [#allocation3], 0
    %9 = vsyncpa [#allocation6], 0
    %10 = vsyncpa [#allocation4], 0
    // Predicated region
    $region2: #{tpu_custom_call.1} parent=1 // pred_check
      _
    $region3: #{tpu_custom_call.1} parent=1 // pred_check_branch
      %12 = sbr.rel (0) target = $region5
    $region4: #{tpu_custom_call.1} parent=1 // pred_region
      %s14 = ssub.s32 128, 128
      %15 = vsyncadd [#allocation3], %s14
      %s17 = sshll.u32 [#allocation2], 4
      %s18 = int_to_ptr.vmem [resolvable:$true] %s17
      %20 = dma.hbm_to_vmem [thread:$0]  %s0, 128, %s18, [#allocation3]
    $region5: #{tpu_custom_call.1} parent=1 // pred_fallthru
      _
    // Predicated region
    $region6: #{tpu_custom_call.1} parent=1 // pred_check
      _
    $region7: #{tpu_custom_call.1} parent=1 // pred_check_branch
      %22 = sbr.rel (0) target = $region9
    $region8: #{tpu_custom_call.1} parent=1 // pred_region
      %s24 = ssub.s32 2048, 2048
      %25 = vsyncadd [#allocation6], %s24
      %s26 = sshll.u32 [#allocation5], 4
      %s27 = int_to_ptr.vmem [resolvable:$true] %s26
      %32 = dma.hbm_to_vmem [thread:$0]  %s1, 2048, %s27, [#allocation6], 128, 128, 8
    $region9: #{tpu_custom_call.1} parent=1 // pred_fallthru
      _
    // Predicated region
    $region10: #{tpu_custom_call.1} parent=1 // pred_check
      _
    $region11: #{tpu_custom_call.1} parent=1 // pred_check_branch
      %34 = sbr.rel (0) target = $region13
    $region12: #{tpu_custom_call.1} parent=1 // pred_region
      _
    $region13: #{tpu_custom_call.1} parent=1 // pred_fallthru
      _
    // Predicated region
    $region14: #{tpu_custom_call.1} parent=1 // pred_check
      _
    $region15: #{tpu_custom_call.1} parent=1 // pred_check_branch
      %36 = sbr.rel (0) target = $region17
    $region16: #{tpu_custom_call.1} parent=1 // pred_region
      %37 = dma.done [#allocation3], 128
    $region17: #{tpu_custom_call.1} parent=1 // pred_fallthru
      _
    // Predicated region
    $region18: #{tpu_custom_call.1} parent=1 // pred_check
      _
    $region19: #{tpu_custom_call.1} parent=1 // pred_check_branch
      %39 = sbr.rel (0) target = $region21
    $region20: #{tpu_custom_call.1} parent=1 // pred_region
      %40 = dma.done [#allocation6], 2048
    $region21: #{tpu_custom_call.1} parent=1 // pred_fallthru
      _
    %v41 = vld [vmem:[#allocation2] sm:$0xff]
    %v42 = vld [vmem:[#allocation5] sm:$0xff]
    %v43 = vld [vmem:[#allocation5 + $0x8] sm:$0xff]
    %v44 = vld [vmem:[#allocation5 + $0x10] sm:$0xff]
    %v45 = vld [vmem:[#allocation5 + $0x18] sm:$0xff]
    %v46 = vld [vmem:[#allocation5 + $0x20] sm:$0xff]
    %v47 = vld [vmem:[#allocation5 + $0x28] sm:$0xff]
    %v48 = vld [vmem:[#allocation5 + $0x30] sm:$0xff]
    %v49 = vld [vmem:[#allocation5 + $0x38] sm:$0xff]
    %v50 = vld [vmem:[#allocation5 + $0x40] sm:$0xff]
    %v51 = vld [vmem:[#allocation5 + $0x48] sm:$0xff]
    %v52 = vld [vmem:[#allocation5 + $0x50] sm:$0xff]
    %v53 = vld [vmem:[#allocation5 + $0x58] sm:$0xff]
    %v54 = vld [vmem:[#allocation5 + $0x60] sm:$0xff]
    %v55 = vld [vmem:[#allocation5 + $0x68] sm:$0xff]
    %v56 = vld [vmem:[#allocation5 + $0x70] sm:$0xff]
    %v57 = vld [vmem:[#allocation5 + $0x78] sm:$0xff]
    %v58 = vld [vmem:[%s2] sm:$0x1]
    %v60 = vlaneseq
    %v61 = vshrl.u32 %v60, 7
    %v62 = vsub.s32 0, %v61
    %v63 = vrot.slane %v58, %v62
    %65 = vmatprep.subr.mxu0 0.0
    %66 = vmatpush1.msra.mxu0 %v42
    %67 = vmatprep.subr.mxu0 0.0
    %68 = vmatpush1.msra.mxu0 %v43
    %69 = vmatprep.subr.mxu0 0.0
    %70 = vmatpush1.msra.mxu0 %v44
    %71 = vmatprep.subr.mxu0 0.0
    %72 = vmatpush1.msra.mxu0 %v45
    %73 = vmatprep.subr.mxu0 0.0
    %74 = vmatpush1.msra.mxu0 %v46
    %75 = vmatprep.subr.mxu0 0.0
    %76 = vmatpush1.msra.mxu0 %v47
    %77 = vmatprep.subr.mxu0 0.0
    %78 = vmatpush1.msra.mxu0 %v48
    %79 = vmatprep.subr.mxu0 0.0
    %80 = vmatpush1.msra.mxu0 %v49
    %81 = vmatprep.subr.mxu0 0.0
    %82 = vmatpush1.msra.mxu0 %v50
    %83 = vmatprep.subr.mxu0 0.0
    %84 = vmatpush1.msra.mxu0 %v51
    %85 = vmatprep.subr.mxu0 0.0
    %86 = vmatpush1.msra.mxu0 %v52
    %87 = vmatprep.subr.mxu0 0.0
    %88 = vmatpush1.msra.mxu0 %v53
    %89 = vmatprep.subr.mxu0 0.0
    %90 = vmatpush1.msra.mxu0 %v54
    %91 = vmatprep.subr.mxu0 0.0
    %92 = vmatpush1.msra.mxu0 %v55
    %93 = vmatprep.subr.mxu0 0.0
    %94 = vmatpush1.msra.mxu0 %v56
    %95 = vmatprep.subr.mxu0 0.0
    %96 = vmatpush1.msra.mxu0 %v57
    %97 = vmatprep.subr.mxu0 0.0
    %98 = vmatpush1.msra.mxu0 0.0
    %99 = vmatprep.subr.mxu0 0.0
    %100 = vmatpush1.msra.mxu0 0.0
    %101 = vmatprep.subr.mxu0 0.0
    %102 = vmatpush1.msra.mxu0 0.0
    %103 = vmatprep.subr.mxu0 0.0
    %104 = vmatpush1.msra.mxu0 0.0
    %105 = vmatprep.subr.mxu0 0.0
    %106 = vmatpush1.msra.mxu0 0.0
    %107 = vmatprep.subr.mxu0 0.0
    %108 = vmatpush1.msra.mxu0 0.0
    %109 = vmatprep.subr.mxu0 0.0
    %110 = vmatpush1.msra.mxu0 0.0
    %111 = vmatprep.subr.mxu0 0.0
    %112 = vmatpush1.msra.mxu0 0.0
    %113 = vmatprep.subr.mxu0 0.0
    %114 = vmatpush1.msra.mxu0 0.0
    %115 = vmatprep.subr.mxu0 0.0
    %116 = vmatpush1.msra.mxu0 0.0
    %117 = vmatprep.subr.mxu0 0.0
    %118 = vmatpush1.msra.mxu0 0.0
    %119 = vmatprep.subr.mxu0 0.0
    %120 = vmatpush1.msra.mxu0 0.0
    %121 = vmatprep.subr.mxu0 0.0
    %122 = vmatpush1.msra.mxu0 0.0
    %123 = vmatprep.subr.mxu0 0.0
    %124 = vmatpush1.msra.mxu0 0.0
    %125 = vmatprep.subr.mxu0 0.0
    %126 = vmatpush1.msra.mxu0 0.0
    %127 = vmatprep.subr.mxu0 0.0
    %128 = vmatpush1.msra.mxu0 0.0
    %129 = vmatprep.mubr.f32.mxu0 0.0
    %130 = vmatmul.mubr.f32.gmra.mrb[0].mxu0 %v41
    %v131 = vpop.f32.mrb[0].mxu0
    %v132 = vadd.f32 %v63, %v131
    %v133 = vpop.f32.mrb[0].mxu0
    %134 = vdwg.mxu0
    %v135 = vtanh.pop %v132
    %136 = vst [vmem:[#allocation7] sm:$0xff] %v135
    // Predicated region
    $region22: #{tpu_custom_call.1} parent=1 // pred_check
      _
    $region23: #{tpu_custom_call.1} parent=1 // pred_check_branch
      %138 = sbr.rel (0) target = $region25
    $region24: #{tpu_custom_call.1} parent=1 // pred_region
      %s140 = ssub.s32 128, 128
      %141 = vsyncadd [#allocation4], %s140
      %s143 = sshll.u32 [#allocation7], 4
      %s144 = int_to_ptr.vmem [resolvable:$true] %s143
      %146 = dma.vmem_to_hbm [thread:$0]  %s144, 128, %s3, [#allocation4]
    $region25: #{tpu_custom_call.1} parent=1 // pred_fallthru
      _
    // Predicated region
    $region26: #{tpu_custom_call.1} parent=1 // pred_check
      _
    $region27: #{tpu_custom_call.1} parent=1 // pred_check_branch
      %148 = sbr.rel (0) target = $region29
    $region28: #{tpu_custom_call.1} parent=1 // pred_region
      %149 = dma.done [#allocation4], 128
    $region29: #{tpu_custom_call.1} parent=1 // pred_fallthru
      _
    %150 = vsyncpa [#allocation3], 1
    %151 = vsyncpa [#allocation6], 1
    %152 = vsyncpa [#allocation4], 1

</llo_original>
